<compile_context>
chip_gen: v6e
topology: v6e:2x2x1
jax: 0.10.0
libtpu: 0.0.40
codegen_flags: <defaults>
</compile_context>

<pallas_src>
import functools

import jax
import jax.numpy as jnp
from jax import lax
from jax.experimental import pallas as pl
from jax.experimental.pallas import tpu as pltpu

_EPS = 1e-8  # matches torch.nn.functional.cosine_similarity default eps


def _orthogonal_loss_kernel(gamma, p_ref, ph_ref, g_ref, gh_ref, o_ref):
    # Load the current (TB, D) tiles; compute in f32 regardless of input dtype
    # (inputs may be bf16 to halve HBM traffic — cast happens in-kernel).
    P = p_ref[...].astype(jnp.float32)
    Ph = ph_ref[...].astype(jnp.float32)
    G = g_ref[...].astype(jnp.float32)
    Gh = gh_ref[...].astype(jnp.float32)

    # Squared norms: computed exactly once per input (4 cross-lane reductions).
    ss_p = jnp.sum(P * P, axis=1, keepdims=True)
    ss_ph = jnp.sum(Ph * Ph, axis=1, keepdims=True)
    ss_g = jnp.sum(G * G, axis=1, keepdims=True)
    ss_gh = jnp.sum(Gh * Gh, axis=1, keepdims=True)

    def abs_cos(a, b, ss_a, ss_b):
        # PyTorch semantics: |dot| / max(||a|| * ||b||, eps)
        #                  = |dot| * rsqrt(max(ss_a * ss_b, eps^2))
        dot = jnp.sum(a * b, axis=1, keepdims=True)
        inv = lax.rsqrt(jnp.maximum(ss_a * ss_b, _EPS * _EPS))
        return jnp.abs(dot * inv)

    # detach() only affects gradients; forward values are identical.
    # TODO(synk): wrap in jax.custom_vjp if the stop-gradient backward
    # semantics of .detach() are ever needed for training.
    positive_pairs = (1.0 - abs_cos(P, Ph, ss_p, ss_ph)) + (
        1.0 - abs_cos(G, Gh, ss_g, ss_gh)
    )
    negative_pairs = (
        abs_cos(P, G, ss_p, ss_g)
        + abs_cos(P, Gh, ss_p, ss_gh)
        + abs_cos(G, Ph, ss_g, ss_ph)
    )
    loss = positive_pairs + gamma * negative_pairs
    o_ref[...] = loss.astype(o_ref.dtype)


def _pick_tile_rows(B, D, itemsize, vmem_budget_bytes=24 * 1024 * 1024):
    """Largest row-tile such that 4 inputs x 2 pipeline buffers fit the budget.

    The 24 MiB budget stays well inside v7x's 32 MiB scoped / 64 MiB physical
    VMEM while still giving multi-MiB blocks on v5e/v6e (>=85% HBM roofline).
    """
    bytes_per_row = 4 * 2 * D * itemsize  # 4 inputs, double-buffered
    tb = vmem_budget_bytes // max(bytes_per_row, 1)
    tb = min(tb, 4096)
    if tb >= B:
        return B  # single block covering the whole batch
    return max(8, (tb // 8) * 8)  # sublane (8) alignment for partial tiles


def orthogonal_loss(P, P_hat, G, G_hat, gamma=0.5):
    """Per-sample orthogonal loss, shape (B,). Inputs are (B, D)."""
    B, D = P.shape
    itemsize = jnp.dtype(P.dtype).itemsize
    tb = _pick_tile_rows(B, D, itemsize)
    grid = (pl.cdiv(B, tb),)

    in_spec = pl.BlockSpec((tb, D), lambda i: (i, 0))
    out_spec = pl.BlockSpec((tb, 1), lambda i: (i, 0))

    cost = pl.CostEstimate(
        flops=int(20 * B * D),
        transcendentals=int(5 * B),
        bytes_accessed=int(4 * B * D * itemsize + 4 * B),
    )

    out = pl.pallas_call(
        functools.partial(_orthogonal_loss_kernel, float(gamma)),
        out_shape=jax.ShapeDtypeStruct((B, 1), jnp.float32),
        grid=grid,
        in_specs=[in_spec, in_spec, in_spec, in_spec],
        out_specs=out_spec,
        compiler_params=pltpu.CompilerParams(
            dimension_semantics=("parallel",),  # megacore-friendly on v7x
            vmem_limit_bytes=64 * 1024 * 1024,
        ),
        cost_estimate=cost,
    )(P, P_hat, G, G_hat)
    return out.reshape(B)


def _reference(P, P_hat, G, G_hat, gamma=0.5):
    # Pure-JAX reference with exact PyTorch cosine_similarity semantics
    # (clamp applied to the *product* of norms).
    def cos(a, b):
        dot = jnp.sum(a * b, axis=1)
        denom = jnp.maximum(
            jnp.linalg.norm(a, axis=1) * jnp.linalg.norm(b, axis=1), _EPS
        )
        return dot / denom

    pos = (1 - jnp.abs(cos(P, P_hat))) + (1 - jnp.abs(cos(G, G_hat)))
    neg = jnp.abs(cos(P, G)) + jnp.abs(cos(P, G_hat)) + jnp.abs(cos(G, P_hat))
    return pos + gamma * neg


if __name__ == "__main__":
    key = jax.random.PRNGKey(0)
    kP, kPh, kG, kGh = jax.random.split(key, 4)
    B, D = 8, 32  # batch=8, hidden=32
    P = jax.random.normal(kP, (B, D), dtype=jnp.float32)
    P_hat = jax.random.normal(kPh, (B, D), dtype=jnp.float32)
    G = jax.random.normal(kG, (B, D), dtype=jnp.float32)
    G_hat = jax.random.normal(kGh, (B, D), dtype=jnp.float32)

    loss = orthogonal_loss(P, P_hat, G, G_hat, gamma=0.5)
    jax.block_until_ready(loss)

    ref = _reference(P, P_hat, G, G_hat, gamma=0.5)
    assert loss.shape == (B,)
    # rsqrt is EUP-accelerated; tolerance loosened slightly vs exact sqrt/div.
    assert jnp.allclose(loss, ref, atol=1e-5, rtol=1e-4), (loss, ref)
    print("KERNEL_OK")
</pallas_src>

<mosaic_0001>
module attributes {stable_mosaic.version = 11 : i64} {
  func.func @_orthogonal_loss_kernel(%arg0: i32, %arg1: memref<8x32xf32, #tpu.memory_space<vmem>>, %arg2: memref<8x32xf32, #tpu.memory_space<vmem>>, %arg3: memref<8x32xf32, #tpu.memory_space<vmem>>, %arg4: memref<8x32xf32, #tpu.memory_space<vmem>>, %arg5: memref<8x1xf32, #tpu.memory_space<vmem>>) attributes {dimension_semantics = [#tpu.dimension_semantics<parallel>], iteration_bounds = array<i64: 1>, scalar_prefetch = 0 : i64, scratch_operands = 0 : i64, tpu.core_type = #tpu.core_type<tc>, window_params = [{transform_indices = @transform_0, window_bounds = array<i64: 8, 32>}, {transform_indices = @transform_1, window_bounds = array<i64: 8, 32>}, {transform_indices = @transform_2, window_bounds = array<i64: 8, 32>}, {transform_indices = @transform_3, window_bounds = array<i64: 8, 32>}, {transform_indices = @transform_4, window_bounds = array<i64: 8, 1>}]} {
    %c0 = arith.constant 0 : index
    %c0_0 = arith.constant 0 : index
    %0 = vector.load %arg1[%c0, %c0_0] : memref<8x32xf32, #tpu.memory_space<vmem>>, vector<8x32xf32>
    %c0_1 = arith.constant 0 : index
    %c0_2 = arith.constant 0 : index
    %1 = vector.load %arg2[%c0_1, %c0_2] : memref<8x32xf32, #tpu.memory_space<vmem>>, vector<8x32xf32>
    %c0_3 = arith.constant 0 : index
    %c0_4 = arith.constant 0 : index
    %2 = vector.load %arg3[%c0_3, %c0_4] : memref<8x32xf32, #tpu.memory_space<vmem>>, vector<8x32xf32>
    %c0_5 = arith.constant 0 : index
    %c0_6 = arith.constant 0 : index
    %3 = vector.load %arg4[%c0_5, %c0_6] : memref<8x32xf32, #tpu.memory_space<vmem>>, vector<8x32xf32>
    %4 = arith.mulf %0, %0 : vector<8x32xf32>
    %cst = arith.constant dense<0.000000e+00> : vector<8xf32>
    %5 = vector.multi_reduction <add>, %4, %cst [1] : vector<8x32xf32> to vector<8xf32>
    %6 = vector.shape_cast %5 : vector<8xf32> to vector<8x1xf32>
    %7 = arith.mulf %1, %1 : vector<8x32xf32>
    %cst_7 = arith.constant dense<0.000000e+00> : vector<8xf32>
    %8 = vector.multi_reduction <add>, %7, %cst_7 [1] : vector<8x32xf32> to vector<8xf32>
    %9 = vector.shape_cast %8 : vector<8xf32> to vector<8x1xf32>
    %10 = arith.mulf %2, %2 : vector<8x32xf32>
    %cst_8 = arith.constant dense<0.000000e+00> : vector<8xf32>
    %11 = vector.multi_reduction <add>, %10, %cst_8 [1] : vector<8x32xf32> to vector<8xf32>
    %12 = vector.shape_cast %11 : vector<8xf32> to vector<8x1xf32>
    %13 = arith.mulf %3, %3 : vector<8x32xf32>
    %cst_9 = arith.constant dense<0.000000e+00> : vector<8xf32>
    %14 = vector.multi_reduction <add>, %13, %cst_9 [1] : vector<8x32xf32> to vector<8xf32>
    %15 = vector.shape_cast %14 : vector<8xf32> to vector<8x1xf32>
    %16 = arith.mulf %0, %1 : vector<8x32xf32>
    %cst_10 = arith.constant dense<0.000000e+00> : vector<8xf32>
    %17 = vector.multi_reduction <add>, %16, %cst_10 [1] : vector<8x32xf32> to vector<8xf32>
    %18 = vector.shape_cast %17 : vector<8xf32> to vector<8x1xf32>
    %19 = arith.mulf %6, %9 : vector<8x1xf32>
    %cst_11 = arith.constant 1.000000e-16 : f32
    %20 = vector.broadcast %cst_11 : f32 to vector<8x1xf32>
    %21 = arith.maximumf %19, %20 : vector<8x1xf32>
    %22 = math.rsqrt %21 : vector<8x1xf32>
    %23 = arith.mulf %18, %22 : vector<8x1xf32>
    %24 = math.absf %23 : vector<8x1xf32>
    %cst_12 = arith.constant 1.000000e+00 : f32
    %25 = vector.broadcast %cst_12 : f32 to vector<8x1xf32>
    %26 = arith.subf %25, %24 : vector<8x1xf32>
    %27 = arith.mulf %2, %3 : vector<8x32xf32>
    %cst_13 = arith.constant dense<0.000000e+00> : vector<8xf32>
    %28 = vector.multi_reduction <add>, %27, %cst_13 [1] : vector<8x32xf32> to vector<8xf32>
    %29 = vector.shape_cast %28 : vector<8xf32> to vector<8x1xf32>
    %30 = arith.mulf %12, %15 : vector<8x1xf32>
    %cst_14 = arith.constant 1.000000e-16 : f32
    %31 = vector.broadcast %cst_14 : f32 to vector<8x1xf32>
    %32 = arith.maximumf %30, %31 : vector<8x1xf32>
    %33 = math.rsqrt %32 : vector<8x1xf32>
    %34 = arith.mulf %29, %33 : vector<8x1xf32>
    %35 = math.absf %34 : vector<8x1xf32>
    %cst_15 = arith.constant 1.000000e+00 : f32
    %36 = vector.broadcast %cst_15 : f32 to vector<8x1xf32>
    %37 = arith.subf %36, %35 : vector<8x1xf32>
    %38 = arith.addf %26, %37 : vector<8x1xf32>
    %39 = arith.mulf %0, %2 : vector<8x32xf32>
    %cst_16 = arith.constant dense<0.000000e+00> : vector<8xf32>
    %40 = vector.multi_reduction <add>, %39, %cst_16 [1] : vector<8x32xf32> to vector<8xf32>
    %41 = vector.shape_cast %40 : vector<8xf32> to vector<8x1xf32>
    %42 = arith.mulf %6, %12 : vector<8x1xf32>
    %cst_17 = arith.constant 1.000000e-16 : f32
    %43 = vector.broadcast %cst_17 : f32 to vector<8x1xf32>
    %44 = arith.maximumf %42, %43 : vector<8x1xf32>
    %45 = math.rsqrt %44 : vector<8x1xf32>
    %46 = arith.mulf %41, %45 : vector<8x1xf32>
    %47 = math.absf %46 : vector<8x1xf32>
    %48 = arith.mulf %0, %3 : vector<8x32xf32>
    %cst_18 = arith.constant dense<0.000000e+00> : vector<8xf32>
    %49 = vector.multi_reduction <add>, %48, %cst_18 [1] : vector<8x32xf32> to vector<8xf32>
    %50 = vector.shape_cast %49 : vector<8xf32> to vector<8x1xf32>
    %51 = arith.mulf %6, %15 : vector<8x1xf32>
    %cst_19 = arith.constant 1.000000e-16 : f32
    %52 = vector.broadcast %cst_19 : f32 to vector<8x1xf32>
    %53 = arith.maximumf %51, %52 : vector<8x1xf32>
    %54 = math.rsqrt %53 : vector<8x1xf32>
    %55 = arith.mulf %50, %54 : vector<8x1xf32>
    %56 = math.absf %55 : vector<8x1xf32>
    %57 = arith.addf %47, %56 : vector<8x1xf32>
    %58 = arith.mulf %2, %1 : vector<8x32xf32>
    %cst_20 = arith.constant dense<0.000000e+00> : vector<8xf32>
    %59 = vector.multi_reduction <add>, %58, %cst_20 [1] : vector<8x32xf32> to vector<8xf32>
    %60 = vector.shape_cast %59 : vector<8xf32> to vector<8x1xf32>
    %61 = arith.mulf %12, %9 : vector<8x1xf32>
    %cst_21 = arith.constant 1.000000e-16 : f32
    %62 = vector.broadcast %cst_21 : f32 to vector<8x1xf32>
    %63 = arith.maximumf %61, %62 : vector<8x1xf32>
    %64 = math.rsqrt %63 : vector<8x1xf32>
    %65 = arith.mulf %60, %64 : vector<8x1xf32>
    %66 = math.absf %65 : vector<8x1xf32>
    %67 = arith.addf %57, %66 : vector<8x1xf32>
    %cst_22 = arith.constant 5.000000e-01 : f32
    %68 = vector.broadcast %cst_22 : f32 to vector<8x1xf32>
    %69 = arith.mulf %68, %67 : vector<8x1xf32>
    %70 = arith.addf %38, %69 : vector<8x1xf32>
    %c0_23 = arith.constant 0 : index
    %c0_24 = arith.constant 0 : index
    %71 = vector.load %arg5[%c0_23, %c0_24] : memref<8x1xf32, #tpu.memory_space<vmem>>, vector<8x1xf32>
    tpu.vector_store %arg5[%c0_23, %c0_24], %70 {strides = array<i32>} : memref<8x1xf32, #tpu.memory_space<vmem>>, vector<8x1xf32>,
    return
  }
  func.func @transform_0(%arg0: i32) -> (i32, i32) {
    %c0_i32 = arith.constant 0 : i32
    %c0_i32_0 = arith.constant 0 : i32
    return %arg0, %c0_i32 : i32, i32
  }
  func.func @transform_1(%arg0: i32) -> (i32, i32) {
    %c0_i32 = arith.constant 0 : i32
    %c0_i32_0 = arith.constant 0 : i32
    return %arg0, %c0_i32 : i32, i32
  }
  func.func @transform_2(%arg0: i32) -> (i32, i32) {
    %c0_i32 = arith.constant 0 : i32
    %c0_i32_0 = arith.constant 0 : i32
    return %arg0, %c0_i32 : i32, i32
  }
  func.func @transform_3(%arg0: i32) -> (i32, i32) {
    %c0_i32 = arith.constant 0 : i32
    %c0_i32_0 = arith.constant 0 : i32
    return %arg0, %c0_i32 : i32, i32
  }
  func.func @transform_4(%arg0: i32) -> (i32, i32) {
    %c0_i32 = arith.constant 0 : i32
    %c0_i32_0 = arith.constant 0 : i32
    return %arg0, %c0_i32 : i32, i32
  }
}

</mosaic_0001>

<llo_original>
// kernel: tpu_custom_call.1
$region0: #{tpu_custom_call.1}
  #allocation0 [shape = 'u32[]', space=smem, size = 0x4, offset = 0x4, fixed_abs, tag = 'smem constant byte address 0x4 - core index']
  #allocation1 [shape = 'u32[144,128]{1,0:T(1,128)}', space=vmem, size = 0x12000, scoped, tag = 'internal scratch']
  %s0 = inlined_call_operand.hbm [shape: f32[8,32], index: 0, kind: input, shape index: {}]
  %s1 = inlined_call_operand.hbm [shape: f32[8,32], index: 1, kind: input, shape index: {}]
  %s2 = inlined_call_operand.hbm [shape: f32[8,32], index: 2, kind: input, shape index: {}]
  %s3 = inlined_call_operand.hbm [shape: f32[8,32], index: 3, kind: input, shape index: {}]
  %s4 = inlined_call_operand.vmem [shape: f32[8,1], index: 4, kind: output, shape index: {}]
  %s5 = sld [smem:[#allocation0]]
  $region42: #{tpu_custom_call.1} parent=0
    _
  %s7 = ssub.s32 1, %s5
  %s8 = scalar_select 0, %s7, %s5
  $region1: #{tpu_custom_call.1} parent=0
    #allocation2 [shape = 'u8[4096]{0}', space=vmem, size = 0x1000, scoped, tag = 'input window, operand 0, single buffered']
    #allocation3 [shape = 's32[1]{0}', space=sflag, size = 0x4, scoped, tag = 'scoped memory for tpu_custom_call.1']
    #allocation4 [shape = 'u8[4096]{0}', space=vmem, size = 0x1000, scoped, tag = 'input window, operand 1, single buffered']
    #allocation5 [shape = 's32[1]{0}', space=sflag, size = 0x4, scoped, tag = 'scoped memory for tpu_custom_call.1']
    #allocation6 [shape = 'u8[4096]{0}', space=vmem, size = 0x1000, scoped, tag = 'input window, operand 2, single buffered']
    #allocation7 [shape = 'u8[4096]{0}', space=vmem, size = 0x1000, scoped, tag = 'input window, operand 3, single buffered']
    #allocation8 [shape = 's32[1]{0}', space=sflag, size = 0x4, scoped, tag = 'scoped memory for tpu_custom_call.1']
    %9 = vsyncpa [#allocation3], 0
    %10 = vsyncpa [#allocation5], 0
    %11 = vsyncpa [#allocation8], 0
    // Predicated region
    $region2: #{tpu_custom_call.1} parent=1 // pred_check
      _
    $region3: #{tpu_custom_call.1} parent=1 // pred_check_branch
      %13 = sbr.rel (0) target = $region5
    $region4: #{tpu_custom_call.1} parent=1 // pred_region
      %s15 = ssub.s32 128, 128
      %16 = vsyncadd [#allocation3], %s15
      %s18 = sshll.u32 [#allocation2], 4
      %s19 = int_to_ptr.vmem [resolvable:$true] %s18
      %21 = dma.hbm_to_vmem [thread:$0]  %s0, 128, %s19, [#allocation3]
    $region5: #{tpu_custom_call.1} parent=1 // pred_fallthru
      _
    // Predicated region
    $region6: #{tpu_custom_call.1} parent=1 // pred_check
      _
    $region7: #{tpu_custom_call.1} parent=1 // pred_check_branch
      %23 = sbr.rel (0) target = $region9
    $region8: #{tpu_custom_call.1} parent=1 // pred_region
      %s25 = ssub.s32 128, 128
      %26 = vsyncadd [#allocation5], %s25
      %s28 = sshll.u32 [#allocation4], 4
      %s29 = int_to_ptr.vmem [resolvable:$true] %s28
      %31 = dma.hbm_to_vmem [thread:$0]  %s1, 128, %s29, [#allocation5]
    $region9: #{tpu_custom_call.1} parent=1 // pred_fallthru
      _
    // Predicated region
    $region10: #{tpu_custom_call.1} parent=1 // pred_check
      _
    $region11: #{tpu_custom_call.1} parent=1 // pred_check_branch
      %33 = sbr.rel (0) target = $region13
    $region12: #{tpu_custom_call.1} parent=1 // pred_region
      %s35 = ssub.s32 128, 128
      %36 = vsyncadd [#allocation5], %s35
      %s38 = sshll.u32 [#allocation6], 4
      %s39 = int_to_ptr.vmem [resolvable:$true] %s38
      %41 = dma.hbm_to_vmem [thread:$0]  %s2, 128, %s39, [#allocation5]
    $region13: #{tpu_custom_call.1} parent=1 // pred_fallthru
      _
    // Predicated region
    $region14: #{tpu_custom_call.1} parent=1 // pred_check
      _
    $region15: #{tpu_custom_call.1} parent=1 // pred_check_branch
      %43 = sbr.rel (0) target = $region17
    $region16: #{tpu_custom_call.1} parent=1 // pred_region
      %s45 = ssub.s32 128, 128
      %46 = vsyncadd [#allocation8], %s45
      %s48 = sshll.u32 [#allocation7], 4
      %s49 = int_to_ptr.vmem [resolvable:$true] %s48
      %51 = dma.hbm_to_vmem [thread:$0]  %s3, 128, %s49, [#allocation8]
    $region17: #{tpu_custom_call.1} parent=1 // pred_fallthru
      _
    // Predicated region
    $region18: #{tpu_custom_call.1} parent=1 // pred_check
      _
    $region19: #{tpu_custom_call.1} parent=1 // pred_check_branch
      %53 = sbr.rel (0) target = $region21
    $region20: #{tpu_custom_call.1} parent=1 // pred_region
      %54 = dma.done [#allocation3], 128
    $region21: #{tpu_custom_call.1} parent=1 // pred_fallthru
      _
    // Predicated region
    $region22: #{tpu_custom_call.1} parent=1 // pred_check
      _
    $region23: #{tpu_custom_call.1} parent=1 // pred_check_branch
      %56 = sbr.rel (0) target = $region25
    $region24: #{tpu_custom_call.1} parent=1 // pred_region
      %57 = dma.done [#allocation5], 128
    $region25: #{tpu_custom_call.1} parent=1 // pred_fallthru
      _
    // Predicated region
    $region26: #{tpu_custom_call.1} parent=1 // pred_check
      _
    $region27: #{tpu_custom_call.1} parent=1 // pred_check_branch
      %59 = sbr.rel (0) target = $region29
    $region28: #{tpu_custom_call.1} parent=1 // pred_region
      %60 = dma.done [#allocation5], 128
    $region29: #{tpu_custom_call.1} parent=1 // pred_fallthru
      _
    // Predicated region
    $region30: #{tpu_custom_call.1} parent=1 // pred_check
      _
    $region31: #{tpu_custom_call.1} parent=1 // pred_check_branch
      %62 = sbr.rel (0) target = $region33
    $region32: #{tpu_custom_call.1} parent=1 // pred_region
      %63 = dma.done [#allocation8], 128
    $region33: #{tpu_custom_call.1} parent=1 // pred_fallthru
      _
    %v64 = vld [vmem:[#allocation2] sm:$0xff]
    %v65 = vld [vmem:[#allocation4] sm:$0xff]
    %v66 = vld [vmem:[#allocation6] sm:$0xff]
    %v67 = vld [vmem:[#allocation7] sm:$0xff]
    %v68 = vmul.f32 %v64, %v64
    %vm69 = vcmask 261120
    %v70 = vsel %vm69, %v68, 0.0
    %71 = vadd.xlane.f32.xlu0 %v70
    %v72 = vpop.xlane.xlu0 %71
    %v73 = vmul.f32 %v65, %v65
    %v74 = vsel %vm69, %v73, 0.0
    %75 = vadd.xlane.f32.xlu0 %v74
    %v76 = vpop.xlane.xlu0 %75
    %v77 = vmul.f32 %v66, %v66
    %v78 = vsel %vm69, %v77, 0.0
    %79 = vadd.xlane.f32.xlu0 %v78
    %v80 = vpop.xlane.xlu0 %79
    %v81 = vmul.f32 %v67, %v67
    %v82 = vsel %vm69, %v81, 0.0
    %83 = vadd.xlane.f32.xlu0 %v82
    %v84 = vpop.xlane.xlu0 %83
    %v85 = vmul.f32 %v64, %v65
    %v86 = vsel %vm69, %v85, 0.0
    %87 = vadd.xlane.f32.xlu0 %v86
    %v88 = vpop.xlane.xlu0 %87
    %v89 = vmul.f32 %v72, %v76
    %v90 = vmax.f32 %v89, 1e-16
    %v91 = vrsqrt.pop %v90
    %v92 = vmul.f32 %v88, %v91
    %v93 = vand.u32 2147483647, %v92
    %v94 = vsub.f32 1.0, %v93
    %v95 = vmul.f32 %v66, %v67
    %v96 = vsel %vm69, %v95, 0.0
    %97 = vadd.xlane.f32.xlu0 %v96
    %v98 = vpop.xlane.xlu0 %97
    %v99 = vmul.f32 %v80, %v84
    %v100 = vmax.f32 %v99, 1e-16
    %v101 = vrsqrt.pop %v100
    %v102 = vmul.f32 %v98, %v101
    %v103 = vand.u32 2147483647, %v102
    %v104 = vsub.f32 1.0, %v103
    %v105 = vadd.f32 %v94, %v104
    %v106 = vmul.f32 %v64, %v66
    %v107 = vsel %vm69, %v106, 0.0
    %108 = vadd.xlane.f32.xlu0 %v107
    %v109 = vpop.xlane.xlu0 %108
    %v110 = vmul.f32 %v72, %v80
    %v111 = vmax.f32 %v110, 1e-16
    %v112 = vrsqrt.pop %v111
    %v113 = vmul.f32 %v109, %v112
    %v114 = vand.u32 2147483647, %v113
    %v115 = vmul.f32 %v64, %v67
    %v116 = vsel %vm69, %v115, 0.0
    %117 = vadd.xlane.f32.xlu0 %v116
    %v118 = vpop.xlane.xlu0 %117
    %v119 = vmul.f32 %v72, %v84
    %v120 = vmax.f32 %v119, 1e-16
    %v121 = vrsqrt.pop %v120
    %v122 = vmul.f32 %v118, %v121
    %v123 = vand.u32 2147483647, %v122
    %v124 = vadd.f32 %v114, %v123
    %v125 = vmul.f32 %v66, %v65
    %v126 = vsel %vm69, %v125, 0.0
    %127 = vadd.xlane.f32.xlu0 %v126
    %v128 = vpop.xlane.xlu0 %127
    %v129 = vmul.f32 %v80, %v76
    %v130 = vmax.f32 %v129, 1e-16
    %v131 = vrsqrt.pop %v130
    %v132 = vmul.f32 %v128, %v131
    %v133 = vand.u32 2147483647, %v132
    %v134 = vadd.f32 %v124, %v133
    %v135 = vmul.f32 %v134, 0.5
    %v136 = vadd.f32 %v105, %v135
    %vm137 = vcmask 7168
    %138 = vst.msk [vmem:[%s4] sm:$0xff] %vm137, %v136
    // Predicated region
    $region34: #{tpu_custom_call.1} parent=1 // pred_check
      _
    $region35: #{tpu_custom_call.1} parent=1 // pred_check_branch
      %140 = sbr.rel (0) target = $region37
    $region36: #{tpu_custom_call.1} parent=1 // pred_region
      _
    $region37: #{tpu_custom_call.1} parent=1 // pred_fallthru
      _
    // Predicated region
    $region38: #{tpu_custom_call.1} parent=1 // pred_check
      _
    $region39: #{tpu_custom_call.1} parent=1 // pred_check_branch
      %142 = sbr.rel (0) target = $region41
    $region40: #{tpu_custom_call.1} parent=1 // pred_region
      _
    $region41: #{tpu_custom_call.1} parent=1 // pred_fallthru
      _
    %143 = vsyncpa [#allocation3], 1
    %144 = vsyncpa [#allocation5], 1
    %145 = vsyncpa [#allocation8], 1

</llo_original>
